<compile_context>
chip_gen: v7x
topology: tpu7x:2x2x1
jax: 0.10.0
libtpu: 0.0.40
codegen_flags: <defaults>
</compile_context>

<pallas_src>
import math

import jax
import jax.numpy as jnp
import numpy as np
from jax.experimental import pallas as pl
from jax.experimental.pallas import tpu as pltpu


def emb_kernel(x_ref, w_ref, pe_ref, o_ref):
    # x_ref:  (TB, L, C)   input block (TB batch rows, full sequence)
    # w_ref:  (3C, D)      fused conv weight, rows ordered [prev-tap; center-tap; next-tap]
    # pe_ref: (L, D)       positional embedding with the conv bias already folded in
    # o_ref:  (TB, L, D)   output block
    TB, L, _ = x_ref.shape
    w = w_ref[...]                                     # resident (3C, D)
    pe = pe_ref[...]                                   # resident (L, D)

    for b in range(TB):                                # TB is small & static -> unrolled
        xb = x_ref[b]                                  # (L, C)
        # Circular taps via XLU rolls (shift must be non-negative).
        x_prev = pltpu.roll(xb, shift=1, axis=0)       # x_prev[t] = x[(t-1) % L]
        x_next = pltpu.roll(xb, shift=L - 1, axis=0)   # x_next[t] = x[(t+1) % L]
        x3 = jnp.concatenate([x_prev, xb, x_next], axis=-1)            # (L, 3C)
        acc = jnp.dot(x3, w, preferred_element_type=jnp.float32)       # (L, D) f32
        o_ref[b] = (acc + pe).astype(o_ref.dtype)


def _pick_batch_block(B, max_tb=8):
    """Largest batch block <= max_tb that divides B while keeping >= 2 grid steps."""
    if B <= 1:
        return 1
    best = 1
    for tb in range(1, min(B, max_tb) + 1):
        if B % tb == 0 and B // tb >= 2:
            best = tb
    return best


def embedding_forward(x, w_fused, pe_plus_bias, *, batch_block=None):
    """x: (B, L, C) f32; w_fused: (3C, D); pe_plus_bias: (L, D). Returns (B, L, D)."""
    B, L, C = x.shape
    C3, D = w_fused.shape
    assert C3 == 3 * C
    assert pe_plus_bias.shape == (L, D)

    TB = _pick_batch_block(B) if batch_block is None else batch_block
    assert B % TB == 0, "batch block must divide B"

    return pl.pallas_call(
        emb_kernel,
        out_shape=jax.ShapeDtypeStruct((B, L, D), x.dtype),
        grid=(B // TB,),
        in_specs=[
            pl.BlockSpec((TB, L, C), lambda i: (i, 0, 0)),
            pl.BlockSpec((C3, D), lambda i: (0, 0)),     # resident weight
            pl.BlockSpec((L, D), lambda i: (0, 0)),      # resident pe (+bias)
        ],
        out_specs=pl.BlockSpec((TB, L, D), lambda i: (i, 0, 0)),
        compiler_params=pltpu.CompilerParams(
            dimension_semantics=("parallel",),
            vmem_limit_bytes=64 * 1024 * 1024,
        ),
    )(x, w_fused, pe_plus_bias)


def make_positional_embedding(max_len, d_model):
    # Mirrors PositionalEmbedding.__init__ exactly (float32).
    position = jnp.arange(0, max_len, dtype=jnp.float32)[:, None]                # (max_len, 1)
    div_term = jnp.exp(
        jnp.arange(0, d_model, 2, dtype=jnp.float32) * -(math.log(10000.0) / d_model)
    )                                                                            # (d_model//2,)
    pe = jnp.zeros((max_len, d_model), dtype=jnp.float32)
    pe = pe.at[:, 0::2].set(jnp.sin(position * div_term))
    pe = pe.at[:, 1::2].set(jnp.cos(position * div_term))
    return pe                                                                    # (max_len, d_model)


def init_params(key, c_in, d_model):
    # Conv1d weight (PyTorch layout: (d_model, c_in, 3)), kaiming_normal fan_in / leaky_relu.
    kw, kb = jax.random.split(key)
    fan_in = c_in * 3
    std = math.sqrt(2.0) / math.sqrt(fan_in)
    w_torch = std * jax.random.normal(kw, (d_model, c_in, 3), dtype=jnp.float32)
    bound = 1.0 / math.sqrt(fan_in)
    bias = jax.random.uniform(kb, (d_model,), jnp.float32, -bound, bound)
    return w_torch, bias


def ref_forward(x, w_torch, bias, pe):
    # Independent reference: circular pad + valid conv in NCH layout, as PyTorch does.
    xc = jnp.transpose(x, (0, 2, 1))                                  # (B, C, L)
    xp = jnp.concatenate([xc[:, :, -1:], xc, xc[:, :, :1]], axis=-1)  # circular pad by 1
    out = jax.lax.conv_general_dilated(
        xp, w_torch, window_strides=(1,), padding="VALID",
        dimension_numbers=("NCH", "OIH", "NCH"))                      # (B, D, L)
    out = jnp.transpose(out, (0, 2, 1)) + bias[None, None, :]         # (B, L, D)
    return out + pe[None, : x.shape[1], :]


if __name__ == "__main__":
    B, L, c_in, d_model = 2, 8, 4, 32
    key = jax.random.PRNGKey(0)
    kx, kp = jax.random.split(key)

    x = jax.random.normal(kx, (B, L, c_in), dtype=jnp.float32)
    w_torch, bias = init_params(kp, c_in, d_model)

    # Repack conv weight for the kernel: (D, C, K) -> (K, C, D) -> (3C, D), tap-major rows.
    w_fused = jnp.transpose(w_torch, (2, 1, 0)).reshape(3 * c_in, d_model)
    pe = make_positional_embedding(max_len=5000, d_model=d_model)[:L]   # (L, D)
    pe_plus_bias = pe + bias[None, :]                                   # fold conv bias into PE

    out = embedding_forward(x, w_fused, pe_plus_bias)
    out = jax.block_until_ready(out)

    ref = ref_forward(x, w_torch, bias, pe)
    np.testing.assert_allclose(np.asarray(out), np.asarray(ref), rtol=1e-5, atol=1e-5)

    print("KERNEL_OK")
</pallas_src>

<mosaic_0001>
module attributes {stable_mosaic.version = 11 : i64} {
  func.func @emb_kernel(%arg0: i32, %arg1: memref<1x8x4xf32, #tpu.memory_space<vmem>>, %arg2: memref<12x32xf32, #tpu.memory_space<vmem>>, %arg3: memref<8x32xf32, #tpu.memory_space<vmem>>, %arg4: memref<1x8x32xf32, #tpu.memory_space<vmem>>) attributes {dimension_semantics = [#tpu.dimension_semantics<parallel>], iteration_bounds = array<i64: 2>, scalar_prefetch = 0 : i64, scratch_operands = 0 : i64, tpu.core_type = #tpu.core_type<tc>, window_params = [{transform_indices = @transform_0, window_bounds = array<i64: 1, 8, 4>}, {pipeline_mode = #tpu.pipeline_mode<synchronous>, transform_indices = @transform_1, window_bounds = array<i64: 12, 32>}, {pipeline_mode = #tpu.pipeline_mode<synchronous>, transform_indices = @transform_2, window_bounds = array<i64: 8, 32>}, {transform_indices = @transform_3, window_bounds = array<i64: 1, 8, 32>}]} {
    %c0 = arith.constant 0 : index
    %c0_0 = arith.constant 0 : index
    %0 = vector.load %arg2[%c0, %c0_0] : memref<12x32xf32, #tpu.memory_space<vmem>>, vector<12x32xf32>
    %c0_1 = arith.constant 0 : index
    %c0_2 = arith.constant 0 : index
    %1 = vector.load %arg3[%c0_1, %c0_2] : memref<8x32xf32, #tpu.memory_space<vmem>>, vector<8x32xf32>
    %c0_3 = arith.constant 0 : index
    %c0_4 = arith.constant 0 : index
    %c0_5 = arith.constant 0 : index
    %2 = vector.load %arg1[%c0_3, %c0_4, %c0_5] : memref<1x8x4xf32, #tpu.memory_space<vmem>>, vector<1x8x4xf32>
    %3 = vector.shape_cast %2 : vector<1x8x4xf32> to vector<8x4xf32>
    %c1_i32 = arith.constant 1 : i32
    %4 = tpu.dynamic_rotate %3 by %c1_i32 dim 0 : vector<8x4xf32>, i32 -> vector<8x4xf32>
    %c7_i32 = arith.constant 7 : i32
    %5 = tpu.dynamic_rotate %3 by %c7_i32 dim 0 : vector<8x4xf32>, i32 -> vector<8x4xf32>
    %6 = tpu.concatenate %4, %3, %5 in 1 : vector<8x4xf32>, vector<8x4xf32>, vector<8x4xf32> -> vector<8x12xf32>
    %cst = arith.constant dense<0.000000e+00> : vector<8x32xf32>
    %7 = tpu.matmul %6, %0, %cst {dimension_numbers = #tpu.dot_dimension_numbers<[1], [0], [0], [1], [0, 0, 1, 1], [], []>} : vector<8x12xf32>, vector<12x32xf32>, vector<8x32xf32> -> vector<8x32xf32>
    %8 = arith.addf %7, %1 : vector<8x32xf32>
    %c0_6 = arith.constant 0 : index
    %c0_7 = arith.constant 0 : index
    %c0_8 = arith.constant 0 : index
    %9 = vector.load %arg4[%c0_6, %c0_7, %c0_8] : memref<1x8x32xf32, #tpu.memory_space<vmem>>, vector<1x8x32xf32>
    %10 = vector.shape_cast %9 : vector<1x8x32xf32> to vector<8x32xf32>
    %11 = vector.shape_cast %8 : vector<8x32xf32> to vector<1x8x32xf32>
    tpu.vector_store %arg4[%c0_6, %c0_7, %c0_8], %11 {strides = array<i32>} : memref<1x8x32xf32, #tpu.memory_space<vmem>>, vector<1x8x32xf32>,
    return
  }
  func.func @transform_0(%arg0: i32) -> (i32, i32, i32) {
    %c0_i32 = arith.constant 0 : i32
    %c0_i32_0 = arith.constant 0 : i32
    %c0_i32_1 = arith.constant 0 : i32
    return %arg0, %c0_i32, %c0_i32_0 : i32, i32, i32
  }
  func.func @transform_1(%arg0: i32) -> (i32, i32) {
    %c0_i32 = arith.constant 0 : i32
    %c0_i32_0 = arith.constant 0 : i32
    %c0_i32_1 = arith.constant 0 : i32
    return %c0_i32, %c0_i32_0 : i32, i32
  }
  func.func @transform_2(%arg0: i32) -> (i32, i32) {
    %c0_i32 = arith.constant 0 : i32
    %c0_i32_0 = arith.constant 0 : i32
    %c0_i32_1 = arith.constant 0 : i32
    return %c0_i32, %c0_i32_0 : i32, i32
  }
  func.func @transform_3(%arg0: i32) -> (i32, i32, i32) {
    %c0_i32 = arith.constant 0 : i32
    %c0_i32_0 = arith.constant 0 : i32
    %c0_i32_1 = arith.constant 0 : i32
    return %arg0, %c0_i32, %c0_i32_0 : i32, i32, i32
  }
}

</mosaic_0001>

<llo_original>
// kernel: tpu_custom_call.1
$region0: #{tpu_custom_call.1}
  #allocation0 [shape = 'u32[]', space=smem, size = 0x4, offset = 0x4, fixed_abs, tag = 'smem constant byte address 0x4 - core index']
  #allocation1 [shape = 'u32[144,128]{1,0:T(1,128)}', space=vmem, size = 0x12000, scoped, tag = 'internal scratch']
  %s0 = inlined_call_operand.hbm [shape: f32[2,8,4], index: 0, kind: input, shape index: {}]
  %s1 = inlined_call_operand.hbm [shape: f32[12,32], index: 1, kind: input, shape index: {}]
  %s2 = inlined_call_operand.hbm [shape: f32[8,32], index: 2, kind: input, shape index: {}]
  %s3 = inlined_call_operand.hbm [shape: f32[2,8,32], index: 3, kind: output, shape index: {}]
  %s4 = sld [smem:[#allocation0]]
  $region57: #{tpu_custom_call.1} parent=0
    _
  %s6 = ssub.s32 1, %s4
  %s7 = scalar_select 0, %s6, %s4
  $region1: #{tpu_custom_call.1} parent=0
    #allocation2 [shape = 'u8[8192]{0}', space=vmem, size = 0x2000, scoped, tag = 'input window, operand 0']
    #allocation3 [shape = 's32[2]{0}', space=sflag, size = 0x8, scoped, tag = 'scoped memory for tpu_custom_call.1']
    #allocation4 [shape = 's32[2]{0}', space=sflag, size = 0x8, scoped, tag = 'scoped memory for tpu_custom_call.1']
    #allocation5 [shape = 'u8[8192]{0}', space=vmem, size = 0x2000, scoped, tag = 'input window, operand 1, single buffered']
    #allocation6 [shape = 's32[1]{0}', space=sflag, size = 0x4, scoped, tag = 'scoped memory for tpu_custom_call.1']
    #allocation7 [shape = 'u8[4096]{0}', space=vmem, size = 0x1000, scoped, tag = 'input window, operand 2, single buffered']
    #allocation8 [shape = 'u8[8192]{0}', space=vmem, size = 0x2000, scoped, tag = 'output window, operand 0']
    %8 = vsyncpa [#allocation3], 0
    %s9 = scalar_lea.sflag [#allocation3], 1
    %10 = vsyncpa %s9, 0
    %11 = vsyncpa [#allocation6], 0
    %12 = vsyncpa [#allocation4], 0
    %s13 = scalar_lea.sflag [#allocation4], 1
    %14 = vsyncpa %s13, 0
    loop: start=0, step=1, limit=4
    $region2: #{tpu_custom_call.1} parent=1 // loop_pre_header
      _
    $region3: #{tpu_custom_call.1} parent=1 // loop_header
      %s16 = sphi 0, %s20
      %p17 = scmp.ge.s32.totalorder %s16, 4
      %s26 = sphi 0, %s28
      %s29 = sphi 0, %s26
      %s30 = sphi 0, %s29
      %s46 = sphi 0, %s30
      %s50 = sphi 0, %s50
      %s52 = sphi 0, %s50
      %s53 = sphi 0, %s52
      %s67 = sphi 0, %s53
      %s71 = sphi 0, %s71
      %s73 = sphi 0, %s71
      %s74 = sphi 0, %s73
      %s88 = sphi 0, %s74
      %s94 = sphi 0, %s96
      %s97 = sphi 0, %s94
      %s98 = sphi 0, %s97
      %s114 = sphi 0, %s98
    $region4: #{tpu_custom_call.1} parent=1 // loop_header_branch
      %19 = sbr.rel (%p17) target = $region8
    $region5: #{tpu_custom_call.1} parent=1 // loop_body
      %s21 = ssub.s32 %s16, 1
      %s22 = ssub.s32 %s16, 2
      %s23 = sadd.s32 %s16, 1
      %s24 = ssub.s32 %s16, %s23
      %p25 = scmp.eq.s32.totalorder %s24, 0
      %s27 = sadd.s32 %s26, 1
      %s28 = scalar_select %p25, %s26, %s27
      %p31 = pneg %p25
      %p32 = scmp.eq.s32.totalorder %s16, 1
      %p33 = por %p31, %p32
      %p34 = scmp.ne.s32.totalorder %s26, %s29
      %p35 = scmp.eq.s32.totalorder %s16, 0
      %p36 = por %p34, %p35
      %p37 = scmp.ne.s32.totalorder %s26, %s29
      %p38 = scmp.eq.s32.totalorder %s21, 1
      %p39 = por %p37, %p38
      %p40 = scmp.ne.s32.totalorder %s29, %s30
      %p41 = scmp.eq.s32.totalorder %s21, 0
      %p42 = por %p40, %p41
      %p43 = scmp.ne.s32.totalorder %s29, %s30
      %p44 = scmp.eq.s32.totalorder %s22, 1
      %p45 = por %p43, %p44
      %p47 = scmp.ne.s32.totalorder %s30, %s46
      %p48 = scmp.eq.s32.totalorder %s22, 0
      %p49 = por %p47, %p48
      %s51 = sadd.s32 %s50, 1
      %p54 = scmp.eq.s32.totalorder %s16, 1
      %p55 = scmp.ne.s32.totalorder %s50, %s52
      %p56 = scmp.eq.s32.totalorder %s16, 0
      %p57 = por %p55, %p56
      %p58 = scmp.ne.s32.totalorder %s50, %s52
      %p59 = scmp.eq.s32.totalorder %s21, 1
      %p60 = por %p58, %p59
      %p61 = scmp.ne.s32.totalorder %s52, %s53
      %p62 = scmp.eq.s32.totalorder %s21, 0
      %p63 = por %p61, %p62
      %p64 = scmp.ne.s32.totalorder %s52, %s53
      %p65 = scmp.eq.s32.totalorder %s22, 1
      %p66 = por %p64, %p65
      %p68 = scmp.ne.s32.totalorder %s53, %s67
      %p69 = scmp.eq.s32.totalorder %s22, 0
      %p70 = por %p68, %p69
      %s72 = sadd.s32 %s71, 1
      %p75 = scmp.eq.s32.totalorder %s16, 1
      %p76 = scmp.ne.s32.totalorder %s71, %s73
      %p77 = scmp.eq.s32.totalorder %s16, 0
      %p78 = por %p76, %p77
      %p79 = scmp.ne.s32.totalorder %s71, %s73
      %p80 = scmp.eq.s32.totalorder %s21, 1
      %p81 = por %p79, %p80
      %p82 = scmp.ne.s32.totalorder %s73, %s74
      %p83 = scmp.eq.s32.totalorder %s21, 0
      %p84 = por %p82, %p83
      %p85 = scmp.ne.s32.totalorder %s73, %s74
      %p86 = scmp.eq.s32.totalorder %s22, 1
      %p87 = por %p85, %p86
      %p89 = scmp.ne.s32.totalorder %s74, %s88
      %p90 = scmp.eq.s32.totalorder %s22, 0
      %p91 = por %p89, %p90
      %s92 = ssub.s32 %s16, %s23
      %p93 = scmp.eq.s32.totalorder %s92, 0
      %s95 = sadd.s32 %s94, 1
      %s96 = scalar_select %p93, %s94, %s95
      %p99 = pneg %p93
      %p100 = scmp.eq.s32.totalorder %s16, 1
      %p101 = por %p99, %p100
      %p102 = scmp.ne.s32.totalorder %s94, %s97
      %p103 = scmp.eq.s32.totalorder %s16, 0
      %p104 = por %p102, %p103
      %p105 = scmp.ne.s32.totalorder %s94, %s97
      %p106 = scmp.eq.s32.totalorder %s21, 1
      %p107 = por %p105, %p106
      %p108 = scmp.ne.s32.totalorder %s97, %s98
      %p109 = scmp.eq.s32.totalorder %s21, 0
      %p110 = por %p108, %p109
      %p111 = scmp.ne.s32.totalorder %s97, %s98
      %p112 = scmp.eq.s32.totalorder %s22, 1
      %p113 = por %p111, %p112
      %p115 = scmp.ne.s32.totalorder %s98, %s114
      %p116 = scmp.eq.s32.totalorder %s22, 0
      %p117 = por %p115, %p116
      %p118 = scmp.le.s32.totalorder 1, %s16
      %p119 = scmp.lt.s32.totalorder %s16, 3
      %p120 = pnand %p118, %p119
      %p121 = pneg %p120
      // Predicated region
      $region9: #{tpu_custom_call.1} parent=5 // pred_check
        _
      $region10: #{tpu_custom_call.1} parent=5 // pred_check_branch
        %123 = sbr.rel (%p120) target = $region12
      $region11: #{tpu_custom_call.1} parent=5 // pred_region
        %s124 = ssub.s32 %s16, 1
        // Predicated region
        $region13: #{tpu_custom_call.1} parent=11 // pred_check
          %p125 = pneg %p63
        $region14: #{tpu_custom_call.1} parent=11 // pred_check_branch
          %127 = sbr.rel (%p125) target = $region16
        $region15: #{tpu_custom_call.1} parent=11 // pred_region
          %s129 = ssub.s32 256, 256
          %130 = vsyncadd [#allocation6], %s129
          %s131 = sshll.u32 [#allocation5], 4
          %s132 = int_to_ptr.vmem [resolvable:$true] %s131
          %137 = dma.hbm_to_vmem [thread:$0]  %s1, 256, %s132, [#allocation6], 128, 128, 8
        $region16: #{tpu_custom_call.1} parent=11 // pred_fallthru
          _
        // Predicated region
        $region17: #{tpu_custom_call.1} parent=11 // pred_check
          %p138 = pneg %p84
        $region18: #{tpu_custom_call.1} parent=11 // pred_check_branch
          %140 = sbr.rel (%p138) target = $region20
        $region19: #{tpu_custom_call.1} parent=11 // pred_region
          %s142 = ssub.s32 128, 128
          %143 = vsyncadd [#allocation6], %s142
          %s145 = sshll.u32 [#allocation7], 4
          %s146 = int_to_ptr.vmem [resolvable:$true] %s145
          %148 = dma.hbm_to_vmem [thread:$0]  %s2, 128, %s146, [#allocation6]
        $region20: #{tpu_custom_call.1} parent=11 // pred_fallthru
          _
      $region12: #{tpu_custom_call.1} parent=5 // pred_fallthru
        _
      %p149 = scmp.lt.s32.totalorder %s16, 2
      // Predicated region
      $region21: #{tpu_custom_call.1} parent=5 // pred_check
        %p150 = pneg %p149
      $region22: #{tpu_custom_call.1} parent=5 // pred_check_branch
        %152 = sbr.rel (%p150) target = $region24
      $region23: #{tpu_custom_call.1} parent=5 // pred_region
        // Predicated region
        $region25: #{tpu_custom_call.1} parent=23 // pred_check
          %p153 = pneg %p36
        $region26: #{tpu_custom_call.1} parent=23 // pred_check_branch
          %155 = sbr.rel (%p153) target = $region28
        $region27: #{tpu_custom_call.1} parent=23 // pred_region
          %s156 = sand.u32 %s26, 1
          %s157 = scalar_lea.sflag [#allocation3], %s156
          %s158 = sand.u32 %s26, 1
          %s159 = smul.addr %s158, 8
          %s160 = scalar_lea.vmem [#allocation2], %s159
          %s162 = ssub.s32 128, 128
          %163 = vsyncadd %s157, %s162
          %s164 = smul.addr %s16, 128
          %s165 = scalar_lea.hbm %s0, %s164
          %s167 = sshll.u32 %s160, 4
          %s168 = int_to_ptr.vmem [resolvable:$true] %s167
          %170 = dma.hbm_to_vmem [thread:$0]  %s165, 128, %s168, %s157
        $region28: #{tpu_custom_call.1} parent=23 // pred_fallthru
          _
      $region24: #{tpu_custom_call.1} parent=5 // pred_fallthru
        _
      %p171 = scmp.le.s32.totalorder 1, %s16
      %p172 = scmp.lt.s32.totalorder %s16, 3
      %p173 = pnand %p171, %p172
      %p174 = pneg %p173
      // Predicated region
      $region29: #{tpu_custom_call.1} parent=5 // pred_check
        _
      $region30: #{tpu_custom_call.1} parent=5 // pred_check_branch
        %176 = sbr.rel (%p173) target = $region32
      $region31: #{tpu_custom_call.1} parent=5 // pred_region
        %s177 = ssub.s32 %s16, 1
        %s178 = sand.u32 %s29, 1
        %s179 = scalar_lea.sflag [#allocation3], %s178
        %s180 = sand.u32 %s29, 1
        %s181 = smul.addr %s180, 8
        %s182 = scalar_lea.vmem [#allocation2], %s181
        // Predicated region
        $region33: #{tpu_custom_call.1} parent=31 // pred_check
          %p183 = pneg %p42
        $region34: #{tpu_custom_call.1} parent=31 // pred_check_branch
          %185 = sbr.rel (%p183) target = $region36
        $region35: #{tpu_custom_call.1} parent=31 // pred_region
          %186 = dma.done %s179, 128
        $region36: #{tpu_custom_call.1} parent=31 // pred_fallthru
          _
        // Predicated region
        $region37: #{tpu_custom_call.1} parent=31 // pred_check
          %p187 = pneg %p63
        $region38: #{tpu_custom_call.1} parent=31 // pred_check_branch
          %189 = sbr.rel (%p187) target = $region40
        $region39: #{tpu_custom_call.1} parent=31 // pred_region
          %190 = dma.done [#allocation6], 256
        $region40: #{tpu_custom_call.1} parent=31 // pred_fallthru
          _
        // Predicated region
        $region41: #{tpu_custom_call.1} parent=31 // pred_check
          %p191 = pneg %p84
        $region42: #{tpu_custom_call.1} parent=31 // pred_check_branch
          %193 = sbr.rel (%p191) target = $region44
        $region43: #{tpu_custom_call.1} parent=31 // pred_region
          %194 = dma.done [#allocation6], 128
        $region44: #{tpu_custom_call.1} parent=31 // pred_fallthru
          _
        %s195 = sand.u32 %s29, 1
        %s196 = scalar_lea.sflag [#allocation3], %s195
        %s197 = sand.u32 %s29, 1
        %s198 = smul.addr %s197, 8
        %s199 = scalar_lea.vmem [#allocation2], %s198
        %p200 = pneg %p42
        %p201 = pneg %p39
        %p202 = pneg %p63
        %p203 = pneg %p60
        %p204 = pneg %p84
        %p205 = pneg %p81
        %p206 = pneg %p110
        %p207 = pneg %p107
        %s208 = sand.u32 %s97, 1
        %s209 = scalar_lea.sflag [#allocation4], %s208
        %s210 = sand.u32 %s97, 1
        %s211 = smul.addr %s210, 8
        %s212 = scalar_lea.vmem [#allocation8], %s211
        %v213 = vld [vmem:[#allocation5] sm:$0xff]
        %v214 = vld [vmem:[#allocation5 + $0x8] sm:$0xf]
        %v215 = vld [vmem:[#allocation7] sm:$0xff]
        %v216 = vld [vmem:[%s182] sm:$0xff]
        %v217 = vrot.slane %v216, 7
        %v218 = vrot.slane %v216, 1
        %220 = vrot.lane.b32.xlu0 %v216, 4
        %v221 = vpop.permute.xlu0 %220
        %224 = vrot.lane.b32.xlu0 %v218, 8
        %v225 = vpop.permute.xlu0 %224
        %vm227 = vcmask 31744
        %v228 = vsel %vm227, %v217, %v221
        %vm229 = vcmask 64512
        %v230 = vsel %vm229, %v228, %v225
        %vm231 = vcmask 97280
        %v233 = vsel %vm231, %v230, 0
        %vm235 = vcmask 1043456
        %v237 = vsel %vm235, %v214, 0
        %239 = vmatprep.subr.mxu0 0.0
        %240 = vmatpush1.msra.mxu0 %v213
        %241 = vmatprep.subr.mxu0 0.0
        %242 = vmatpush1.msra.mxu0 %v237
        %243 = vmatprep.subr.mxu0 0.0
        %244 = vmatpush1.msra.mxu0 0.0
        %245 = vmatprep.subr.mxu0 0.0
        %246 = vmatpush1.msra.mxu0 0.0
        %247 = vmatprep.subr.mxu0 0.0
        %248 = vmatpush1.msra.mxu0 0.0
        %249 = vmatprep.subr.mxu0 0.0
        %250 = vmatpush1.msra.mxu0 0.0
        %251 = vmatprep.subr.mxu0 0.0
        %252 = vmatpush1.msra.mxu0 0.0
        %253 = vmatprep.subr.mxu0 0.0
        %254 = vmatpush1.msra.mxu0 0.0
        %255 = vmatprep.subr.mxu0 0.0
        %256 = vmatpush1.msra.mxu0 0.0
        %257 = vmatprep.subr.mxu0 0.0
        %258 = vmatpush1.msra.mxu0 0.0
        %259 = vmatprep.subr.mxu0 0.0
        %260 = vmatpush1.msra.mxu0 0.0
        %261 = vmatprep.subr.mxu0 0.0
        %262 = vmatpush1.msra.mxu0 0.0
        %263 = vmatprep.subr.mxu0 0.0
        %264 = vmatpush1.msra.mxu0 0.0
        %265 = vmatprep.subr.mxu0 0.0
        %266 = vmatpush1.msra.mxu0 0.0
        %267 = vmatprep.subr.mxu0 0.0
        %268 = vmatpush1.msra.mxu0 0.0
        %269 = vmatprep.subr.mxu0 0.0
        %270 = vmatpush1.msra.mxu0 0.0
        %271 = vmatprep.subr.mxu0 0.0
        %272 = vmatpush1.msra.mxu0 0.0
        %273 = vmatprep.subr.mxu0 0.0
        %274 = vmatpush1.msra.mxu0 0.0
        %275 = vmatprep.subr.mxu0 0.0
        %276 = vmatpush1.msra.mxu0 0.0
        %277 = vmatprep.subr.mxu0 0.0
        %278 = vmatpush1.msra.mxu0 0.0
        %279 = vmatprep.subr.mxu0 0.0
        %280 = vmatpush1.msra.mxu0 0.0
        %281 = vmatprep.subr.mxu0 0.0
        %282 = vmatpush1.msra.mxu0 0.0
        %283 = vmatprep.subr.mxu0 0.0
        %284 = vmatpush1.msra.mxu0 0.0
        %285 = vmatprep.subr.mxu0 0.0
        %286 = vmatpush1.msra.mxu0 0.0
        %287 = vmatprep.subr.mxu0 0.0
        %288 = vmatpush1.msra.mxu0 0.0
        %289 = vmatprep.subr.mxu0 0.0
        %290 = vmatpush1.msra.mxu0 0.0
        %291 = vmatprep.subr.mxu0 0.0
        %292 = vmatpush1.msra.mxu0 0.0
        %293 = vmatprep.subr.mxu0 0.0
        %294 = vmatpush1.msra.mxu0 0.0
        %295 = vmatprep.subr.mxu0 0.0
        %296 = vmatpush1.msra.mxu0 0.0
        %297 = vmatprep.subr.mxu0 0.0
        %298 = vmatpush1.msra.mxu0 0.0
        %299 = vmatprep.subr.mxu0 0.0
        %300 = vmatpush1.msra.mxu0 0.0
        %301 = vmatprep.subr.mxu0 0.0
        %302 = vmatpush1.msra.mxu0 0.0
        %303 = vmatprep.mubr.f32.mxu0 0.0
        %304 = vmatmul.mubr.f32.gmra.mrb[0].mxu0 %v233
        %v305 = vpop.f32.mrb[0].mxu0
        %v306 = vadd.f32 %v215, %v305
        %v307 = vpop.f32.mrb[0].mxu0
        %308 = vdwg.mxu0
        %vm309 = vcmask 261120
        %310 = vst.msk [vmem:[%s212] sm:$0xff] %vm309, %v306
        %s311 = sand.u32 %s97, 1
        %s312 = scalar_lea.sflag [#allocation4], %s311
        %s313 = sand.u32 %s97, 1
        %s314 = smul.addr %s313, 8
        %s315 = scalar_lea.vmem [#allocation8], %s314
        // Predicated region
        $region45: #{tpu_custom_call.1} parent=31 // pred_check
          %p316 = pneg %p107
        $region46: #{tpu_custom_call.1} parent=31 // pred_check_branch
          %318 = sbr.rel (%p316) target = $region48
        $region47: #{tpu_custom_call.1} parent=31 // pred_region
          %s320 = ssub.s32 128, 128
          %321 = vsyncadd %s312, %s320
          %s322 = smul.addr %s21, 128
          %s323 = scalar_lea.hbm %s3, %s322
          %s325 = sshll.u32 %s315, 4
          %s326 = int_to_ptr.vmem [resolvable:$true] %s325
          %328 = dma.vmem_to_hbm [thread:$0]  %s326, 128, %s323, %s312
        $region48: #{tpu_custom_call.1} parent=31 // pred_fallthru
          _
      $region32: #{tpu_custom_call.1} parent=5 // pred_fallthru
        _
      %p329 = scmp.le.s32.totalorder 2, %s16
      // Predicated region
      $region49: #{tpu_custom_call.1} parent=5 // pred_check
        %p330 = pneg %p329
      $region50: #{tpu_custom_call.1} parent=5 // pred_check_branch
        %332 = sbr.rel (%p330) target = $region52
      $region51: #{tpu_custom_call.1} parent=5 // pred_region
        %s333 = ssub.s32 %s16, 2
        // Predicated region
        $region53: #{tpu_custom_call.1} parent=51 // pred_check
          %p334 = pneg %p113
        $region54: #{tpu_custom_call.1} parent=51 // pred_check_branch
          %336 = sbr.rel (%p334) target = $region56
        $region55: #{tpu_custom_call.1} parent=51 // pred_region
          %s337 = sand.u32 %s98, 1
          %s338 = scalar_lea.sflag [#allocation4], %s337
          %s339 = sand.u32 %s98, 1
          %s340 = smul.addr %s339, 8
          %s341 = scalar_lea.vmem [#allocation8], %s340
          %342 = dma.done %s338, 128
        $region56: #{tpu_custom_call.1} parent=51 // pred_fallthru
          _
      $region52: #{tpu_custom_call.1} parent=5 // pred_fallthru
        _
    $region6: #{tpu_custom_call.1} parent=1 // loop_footer
      %s20 = sadd.s32 1, %s16
    $region7: #{tpu_custom_call.1} parent=1 // loop_footer_branch
      %15 = sbr.rel target = $region3
    $region8: #{tpu_custom_call.1} parent=1 // loop_exit
      _
    %343 = vsyncpa [#allocation3], 1
    %s344 = scalar_lea.sflag [#allocation3], 1
    %345 = vsyncpa %s344, 1
    %346 = vsyncpa [#allocation6], 1
    %347 = vsyncpa [#allocation4], 1
    %s348 = scalar_lea.sflag [#allocation4], 1
    %349 = vsyncpa %s348, 1

</llo_original>
